<compile_context>
chip_gen: v7x
topology: tpu7x:2x2x1
jax: 0.10.0
libtpu: 0.0.40
codegen_flags: <defaults>
</compile_context>

<pallas_src>
import functools

import jax
import jax.numpy as jnp
from jax import lax
from jax.experimental import pallas as pl
from jax.experimental.pallas import tpu as pltpu

# dot_general dims: contract lhs dim 1 with rhs dim 1 ("A @ B.T", NT matmul).
_NT_DIMS = (((1,), (1,)), ((), ()))


def _qnet_kernel(x_ref, w1t_ref, b1_ref, w2t_ref, b2_ref, ot_ref):
    """Fused 2-layer MLP on one batch tile, feature-major output.

    x_ref  : (TB, IN)  input tile (f32 in HBM, cast in-kernel)
    w1t_ref: (H, IN)   layer-1 weight, transposed
    b1_ref : (H, 1)    layer-1 bias (f32)
    w2t_ref: (O, H)    layer-2 weight, transposed
    b2_ref : (O, 1)    layer-2 bias (f32)
    ot_ref : (O, TB)   output tile, batch on the 128-lane axis
    """
    x = x_ref[...].astype(w1t_ref.dtype)        # in-kernel cast; x stays f32 in HBM
    # hT = W1^T @ x^T -> (H, TB), f32 accumulation on the MXU.
    h_t = lax.dot_general(w1t_ref[...], x, _NT_DIMS,
                          preferred_element_type=jnp.float32)
    h_t = jnp.maximum(h_t + b1_ref[...], 0.0)   # (H,1) broadcasts over lanes
    # outT = W2^T @ hT -> (O, TB)
    out_t = jnp.dot(w2t_ref[...], h_t.astype(w2t_ref.dtype),
                    preferred_element_type=jnp.float32)
    ot_ref[...] = (out_t + b2_ref[...]).astype(ot_ref.dtype)


@functools.partial(jax.jit, static_argnames=("batch_tile", "compute_dtype"))
def linear_qnet_forward(x, w1, b1, w2, b2, *, batch_tile=1024,
                        compute_dtype=jnp.float32):
    """Fused forward pass of Linear_Qnet.

    x : (B, inputSize) float32
    w1: (inputSize, hiddenSize),  b1: (1, hiddenSize)
    w2: (hiddenSize, outputSize), b2: (1, outputSize)
    returns (B, outputSize) float32
    """
    B, IN = x.shape
    H = w1.shape[1]
    O = w2.shape[1]

    # KB-scale parameter reshuffles (negligible): transpose weights for the
    # feature-major kernel, cast MXU operands, keep biases f32 for the epilogue.
    w1t = w1.T.astype(compute_dtype)            # (H, IN)
    w2t = w2.T.astype(compute_dtype)            # (O, H)
    b1c = b1.reshape(H, 1).astype(jnp.float32)  # (H, 1)
    b2c = b2.reshape(O, 1).astype(jnp.float32)  # (O, 1)

    if B <= batch_tile:
        # Small-batch / inference path: single grid point, all operands
        # VMEM-resident (whole-array blocks; always layout-legal).
        vmem = pl.BlockSpec(memory_space=pltpu.MemorySpace.VMEM)
        out_t = pl.pallas_call(
            _qnet_kernel,
            out_shape=jax.ShapeDtypeStruct((O, B), jnp.float32),
            in_specs=[vmem, vmem, vmem, vmem, vmem],
            out_specs=vmem,
        )(x, w1t, b1c, w2t, b2c)
        return out_t.T                          # (B, O)

    # Batched / training path: tile the batch dim.  x and the output tile are
    # double-buffered by the Pallas pipeline; weights/biases stay resident.
    # No wrapper-side padding of x: Pallas masks the ragged last block.
    assert batch_tile % 128 == 0, "batch_tile must be a multiple of 128"
    TB = batch_tile
    n_tiles = pl.cdiv(B, TB)

    out_t = pl.pallas_call(
        _qnet_kernel,
        out_shape=jax.ShapeDtypeStruct((O, B), jnp.float32),
        grid=(n_tiles,),
        in_specs=[
            pl.BlockSpec((TB, IN), lambda i: (i, 0)),   # x: streamed per tile
            pl.BlockSpec((H, IN), lambda i: (0, 0)),    # W1^T: resident
            pl.BlockSpec((H, 1), lambda i: (0, 0)),     # b1:   resident
            pl.BlockSpec((O, H), lambda i: (0, 0)),     # W2^T: resident
            pl.BlockSpec((O, 1), lambda i: (0, 0)),     # b2:   resident
        ],
        out_specs=pl.BlockSpec((O, TB), lambda i: (0, i)),
        compiler_params=pltpu.CompilerParams(
            dimension_semantics=("parallel",),  # shard batch axis across TCs (v7x)
        ),
    )(x, w1t, b1c, w2t, b2c)
    return out_t.T                              # tiny (O, B) -> (B, O) transpose


def init_params(key, input_size, hidden_size, output_size):
    """Deterministic init mimicking PyTorch nn.Linear (uniform +/- 1/sqrt(fan_in))."""
    k1, k2, k3, k4 = jax.random.split(key, 4)
    lim1 = 1.0 / jnp.sqrt(input_size)
    lim2 = 1.0 / jnp.sqrt(hidden_size)
    w1 = jax.random.uniform(k1, (input_size, hidden_size), jnp.float32, -lim1, lim1)
    b1 = jax.random.uniform(k2, (1, hidden_size), jnp.float32, -lim1, lim1)
    w2 = jax.random.uniform(k3, (hidden_size, output_size), jnp.float32, -lim2, lim2)
    b2 = jax.random.uniform(k4, (1, output_size), jnp.float32, -lim2, lim2)
    return w1, b1, w2, b2


def _reference(x, w1, b1, w2, b2):
    return jnp.maximum(x @ w1 + b1, 0.0) @ w2 + b2


# TODO(synk): Linear_Qnet.save() (torch checkpoint I/O) is host-side and has no
# kernel equivalent; only the forward pass is implemented here.

if __name__ == "__main__":
    # Shapes consistent with typical Linear_Qnet usage (snake agent):
    # inputSize=11 state features, hiddenSize=32, outputSize=3 actions.
    IN, HID, OUT = 11, 32, 3

    key = jax.random.PRNGKey(0)
    kx1, kx2, kp = jax.random.split(key, 3)
    w1, b1, w2, b2 = init_params(kp, IN, HID, OUT)

    # 1) Small-batch inference path (single VMEM-resident block).
    x_small = jax.random.normal(kx1, (4, IN), jnp.float32)
    y_small = jax.block_until_ready(linear_qnet_forward(x_small, w1, b1, w2, b2))
    ref_small = _reference(x_small, w1, b1, w2, b2)
    assert y_small.shape == (4, OUT)
    assert jnp.allclose(y_small, ref_small, atol=1e-5, rtol=1e-5)

    # 2) Training-sized batch, non-multiple of the tile: ragged last block is
    #    handled by Pallas masking (no wrapper-side padding pass over x).
    x_big = jax.random.normal(kx2, (1024 + 40, IN), jnp.float32)
    y_big = jax.block_until_ready(
        linear_qnet_forward(x_big, w1, b1, w2, b2, batch_tile=1024))
    ref_big = _reference(x_big, w1, b1, w2, b2)
    assert y_big.shape == (1024 + 40, OUT)
    assert jnp.allclose(y_big, ref_big, atol=1e-5, rtol=1e-5)

    # 3) Same batched path with bf16 MXU operands (x cast in-kernel; f32
    #    accumulation and f32 bias/ReLU epilogue).
    y_bf16 = jax.block_until_ready(
        linear_qnet_forward(x_big, w1, b1, w2, b2, batch_tile=1024,
                            compute_dtype=jnp.bfloat16))
    assert jnp.allclose(y_bf16, ref_big, atol=5e-2, rtol=5e-2)

    print("KERNEL_OK")
</pallas_src>

<mosaic_0001>
module attributes {stable_mosaic.version = 11 : i64} {
  func.func @_qnet_kernel(%arg0: memref<4x11xf32, #tpu.memory_space<vmem>>, %arg1: memref<32x11xf32, #tpu.memory_space<vmem>>, %arg2: memref<32x1xf32, #tpu.memory_space<vmem>>, %arg3: memref<3x32xf32, #tpu.memory_space<vmem>>, %arg4: memref<3x1xf32, #tpu.memory_space<vmem>>, %arg5: memref<3x4xf32, #tpu.memory_space<vmem>>) attributes {dimension_semantics = [], scalar_prefetch = 0 : i64, scratch_operands = 0 : i64, tpu.core_type = #tpu.core_type<tc>} {
    %c0 = arith.constant 0 : index
    %c0_0 = arith.constant 0 : index
    %0 = vector.load %arg0[%c0, %c0_0] : memref<4x11xf32, #tpu.memory_space<vmem>>, vector<4x11xf32>
    %c0_1 = arith.constant 0 : index
    %c0_2 = arith.constant 0 : index
    %1 = vector.load %arg1[%c0_1, %c0_2] : memref<32x11xf32, #tpu.memory_space<vmem>>, vector<32x11xf32>
    %cst = arith.constant dense<0.000000e+00> : vector<32x4xf32>
    %2 = tpu.matmul %1, %0, %cst {dimension_numbers = #tpu.dot_dimension_numbers<[1], [1], [0], [0], [0, 0, 1, 0], [], []>} : vector<32x11xf32>, vector<4x11xf32>, vector<32x4xf32> -> vector<32x4xf32>
    %c0_3 = arith.constant 0 : index
    %c0_4 = arith.constant 0 : index
    %3 = vector.load %arg2[%c0_3, %c0_4] : memref<32x1xf32, #tpu.memory_space<vmem>>, vector<32x1xf32>
    %4 = vector.broadcast %3 : vector<32x1xf32> to vector<32x4xf32>
    %5 = arith.addf %2, %4 : vector<32x4xf32>
    %cst_5 = arith.constant 0.000000e+00 : f32
    %6 = vector.broadcast %cst_5 : f32 to vector<32x4xf32>
    %7 = arith.maximumf %5, %6 : vector<32x4xf32>
    %c0_6 = arith.constant 0 : index
    %c0_7 = arith.constant 0 : index
    %8 = vector.load %arg3[%c0_6, %c0_7] : memref<3x32xf32, #tpu.memory_space<vmem>>, vector<3x32xf32>
    %cst_8 = arith.constant dense<0.000000e+00> : vector<3x4xf32>
    %9 = tpu.matmul %8, %7, %cst_8 {dimension_numbers = #tpu.dot_dimension_numbers<[1], [0], [0], [1], [0, 0, 1, 1], [], []>} : vector<3x32xf32>, vector<32x4xf32>, vector<3x4xf32> -> vector<3x4xf32>
    %c0_9 = arith.constant 0 : index
    %c0_10 = arith.constant 0 : index
    %10 = vector.load %arg4[%c0_9, %c0_10] : memref<3x1xf32, #tpu.memory_space<vmem>>, vector<3x1xf32>
    %11 = vector.broadcast %10 : vector<3x1xf32> to vector<3x4xf32>
    %12 = arith.addf %9, %11 : vector<3x4xf32>
    %c0_11 = arith.constant 0 : index
    %c0_12 = arith.constant 0 : index
    %13 = vector.load %arg5[%c0_11, %c0_12] : memref<3x4xf32, #tpu.memory_space<vmem>>, vector<3x4xf32>
    tpu.vector_store %arg5[%c0_11, %c0_12], %12 {strides = array<i32>} : memref<3x4xf32, #tpu.memory_space<vmem>>, vector<3x4xf32>,
    return
  }
}

</mosaic_0001>

<llo_original>
// kernel: linear_qnet_forward.1
$region0: #{linear_qnet_forward.1}
  #allocation0 [shape = 'u32[]', space=smem, size = 0x4, offset = 0x4, fixed_abs, tag = 'smem constant byte address 0x4 - core index']
  #allocation1 [shape = 'u32[144,128]{1,0:T(1,128)}', space=vmem, size = 0x12000, scoped, tag = 'internal scratch']
  %s0 = inlined_call_operand.vmem [shape: f32[4,11], index: 0, kind: input, shape index: {}]
  %s1 = inlined_call_operand.vmem [shape: f32[32,11], index: 1, kind: input, shape index: {}]
  %s2 = inlined_call_operand.vmem [shape: f32[32,1], index: 2, kind: input, shape index: {}]
  %s3 = inlined_call_operand.vmem [shape: f32[3,32], index: 3, kind: input, shape index: {}]
  %s4 = inlined_call_operand.vmem [shape: f32[3,1], index: 4, kind: input, shape index: {}]
  %s5 = inlined_call_operand.vmem [shape: f32[3,4], index: 5, kind: output, shape index: {}]
  %s6 = sld [smem:[#allocation0]]
  $region30: #{linear_qnet_forward.1} parent=0
    _
  %s8 = ssub.s32 1, %s6
  %s9 = scalar_select 0, %s8, %s6
  // Predicated region
  $region2: #{linear_qnet_forward.1} parent=0 // pred_check
    _
  $region3: #{linear_qnet_forward.1} parent=0 // pred_check_branch
    %11 = sbr.rel (0) target = $region5
  $region4: #{linear_qnet_forward.1} parent=0 // pred_region
    _
  $region5: #{linear_qnet_forward.1} parent=0 // pred_fallthru
    _
  // Predicated region
  $region6: #{linear_qnet_forward.1} parent=0 // pred_check
    _
  $region7: #{linear_qnet_forward.1} parent=0 // pred_check_branch
    %13 = sbr.rel (0) target = $region9
  $region8: #{linear_qnet_forward.1} parent=0 // pred_region
    _
  $region9: #{linear_qnet_forward.1} parent=0 // pred_fallthru
    _
  // Predicated region
  $region10: #{linear_qnet_forward.1} parent=0 // pred_check
    _
  $region11: #{linear_qnet_forward.1} parent=0 // pred_check_branch
    %15 = sbr.rel (0) target = $region13
  $region12: #{linear_qnet_forward.1} parent=0 // pred_region
    _
  $region13: #{linear_qnet_forward.1} parent=0 // pred_fallthru
    _
  // Predicated region
  $region14: #{linear_qnet_forward.1} parent=0 // pred_check
    _
  $region15: #{linear_qnet_forward.1} parent=0 // pred_check_branch
    %17 = sbr.rel (0) target = $region17
  $region16: #{linear_qnet_forward.1} parent=0 // pred_region
    _
  $region17: #{linear_qnet_forward.1} parent=0 // pred_fallthru
    _
  // Predicated region
  $region18: #{linear_qnet_forward.1} parent=0 // pred_check
    _
  $region19: #{linear_qnet_forward.1} parent=0 // pred_check_branch
    %19 = sbr.rel (0) target = $region21
  $region20: #{linear_qnet_forward.1} parent=0 // pred_region
    _
  $region21: #{linear_qnet_forward.1} parent=0 // pred_fallthru
    _
  %v20 = vld [vmem:[%s0] sm:$0xf]
  %v21 = vld [vmem:[%s1] sm:$0xff]
  %v22 = vld [vmem:[%s1 + $0x8] sm:$0xff]
  %v23 = vld [vmem:[%s1 + $0x10] sm:$0xff]
  %v24 = vld [vmem:[%s1 + $0x18] sm:$0xff]
  %v25 = vld [vmem:[%s2] sm:$0xff]
  %v26 = vld [vmem:[%s2 + $0x8] sm:$0xff]
  %v27 = vld [vmem:[%s2 + $0x10] sm:$0xff]
  %v28 = vld [vmem:[%s2 + $0x18] sm:$0xff]
  %30 = vset.pattern.permute.xlu0 0
  %31 = vperm.xlu0 %30, %v25
  %v32 = vpop.permute.xlu0 %31
  %35 = vset.pattern.permute.xlu0 0
  %36 = vperm.xlu0 %35, %v26
  %v37 = vpop.permute.xlu0 %36
  %40 = vset.pattern.permute.xlu0 0
  %41 = vperm.xlu0 %40, %v27
  %v42 = vpop.permute.xlu0 %41
  %45 = vset.pattern.permute.xlu0 0
  %46 = vperm.xlu0 %45, %v28
  %v47 = vpop.permute.xlu0 %46
  %vm49 = vcmask 89088
  %v51 = vsel %vm49, %v21, 0
  %v54 = vsel %vm49, %v22, 0
  %v57 = vsel %vm49, %v23, 0
  %v60 = vsel %vm49, %v24, 0
  %v63 = vsel %vm49, %v20, 0
  %65 = vmatprep.subr.mxu0 0.0
  %66 = vmatpush1.xpose.msra.mxu0 %v63
  %67 = vmatprep.subr.mxu0 0.0
  %68 = vmatpush1.xpose.msra.mxu0 0.0
  %69 = vmatprep.subr.mxu0 0.0
  %70 = vmatpush1.xpose.msra.mxu0 0.0
  %71 = vmatprep.subr.mxu0 0.0
  %72 = vmatpush1.xpose.msra.mxu0 0.0
  %73 = vmatprep.subr.mxu0 0.0
  %74 = vmatpush1.xpose.msra.mxu0 0.0
  %75 = vmatprep.subr.mxu0 0.0
  %76 = vmatpush1.xpose.msra.mxu0 0.0
  %77 = vmatprep.subr.mxu0 0.0
  %78 = vmatpush1.xpose.msra.mxu0 0.0
  %79 = vmatprep.subr.mxu0 0.0
  %80 = vmatpush1.xpose.msra.mxu0 0.0
  %81 = vmatprep.subr.mxu0 0.0
  %82 = vmatpush1.xpose.msra.mxu0 0.0
  %83 = vmatprep.subr.mxu0 0.0
  %84 = vmatpush1.xpose.msra.mxu0 0.0
  %85 = vmatprep.subr.mxu0 0.0
  %86 = vmatpush1.xpose.msra.mxu0 0.0
  %87 = vmatprep.subr.mxu0 0.0
  %88 = vmatpush1.xpose.msra.mxu0 0.0
  %89 = vmatprep.subr.mxu0 0.0
  %90 = vmatpush1.xpose.msra.mxu0 0.0
  %91 = vmatprep.subr.mxu0 0.0
  %92 = vmatpush1.xpose.msra.mxu0 0.0
  %93 = vmatprep.subr.mxu0 0.0
  %94 = vmatpush1.xpose.msra.mxu0 0.0
  %95 = vmatprep.subr.mxu0 0.0
  %96 = vmatpush1.xpose.msra.mxu0 0.0
  %97 = vmatprep.subr.mxu0 0.0
  %98 = vmatpush1.xpose.msra.mxu0 0.0
  %99 = vmatprep.subr.mxu0 0.0
  %100 = vmatpush1.xpose.msra.mxu0 0.0
  %101 = vmatprep.subr.mxu0 0.0
  %102 = vmatpush1.xpose.msra.mxu0 0.0
  %103 = vmatprep.subr.mxu0 0.0
  %104 = vmatpush1.xpose.msra.mxu0 0.0
  %105 = vmatprep.subr.mxu0 0.0
  %106 = vmatpush1.xpose.msra.mxu0 0.0
  %107 = vmatprep.subr.mxu0 0.0
  %108 = vmatpush1.xpose.msra.mxu0 0.0
  %109 = vmatprep.subr.mxu0 0.0
  %110 = vmatpush1.xpose.msra.mxu0 0.0
  %111 = vmatprep.subr.mxu0 0.0
  %112 = vmatpush1.xpose.msra.mxu0 0.0
  %113 = vmatprep.subr.mxu0 0.0
  %114 = vmatpush1.xpose.msra.mxu0 0.0
  %115 = vmatprep.subr.mxu0 0.0
  %116 = vmatpush1.xpose.msra.mxu0 0.0
  %117 = vmatprep.subr.mxu0 0.0
  %118 = vmatpush1.xpose.msra.mxu0 0.0
  %119 = vmatprep.subr.mxu0 0.0
  %120 = vmatpush1.xpose.msra.mxu0 0.0
  %121 = vmatprep.subr.mxu0 0.0
  %122 = vmatpush1.xpose.msra.mxu0 0.0
  %123 = vmatprep.subr.mxu0 0.0
  %124 = vmatpush1.xpose.msra.mxu0 0.0
  %125 = vmatprep.subr.mxu0 0.0
  %126 = vmatpush1.xpose.msra.mxu0 0.0
  %127 = vmatprep.subr.mxu0 0.0
  %128 = vmatpush1.xpose.msra.mxu0 0.0
  %129 = vmatprep.mubr.f32.mxu0 0.0
  %130 = vmatmul.mubr.f32.gmra.mrb[0].mxu0 %v51
  %v131 = vpop.f32.mrb[0].mxu0
  %v132 = vadd.f32 %v32, %v131
  %v133 = vpop.f32.mrb[0].mxu0
  %134 = vmatprep.mubr.f32.mxu0 0.0
  %135 = vmatmul.mubr.f32.gmra.mrb[0].mxu0 %v54
  %v136 = vpop.f32.mrb[0].mxu0
  %v137 = vadd.f32 %v37, %v136
  %v138 = vpop.f32.mrb[0].mxu0
  %139 = vmatprep.mubr.f32.mxu0 0.0
  %140 = vmatmul.mubr.f32.gmra.mrb[0].mxu0 %v57
  %v141 = vpop.f32.mrb[0].mxu0
  %v142 = vadd.f32 %v42, %v141
  %v143 = vpop.f32.mrb[0].mxu0
  %144 = vmatprep.mubr.f32.mxu0 0.0
  %145 = vmatmul.mubr.f32.gmra.mrb[0].mxu0 %v60
  %v146 = vpop.f32.mrb[0].mxu0
  %v147 = vadd.f32 %v47, %v146
  %v148 = vpop.f32.mrb[0].mxu0
  %149 = vdwg.mxu0
  %v150 = vmax.f32 %v132, 0.0
  %v151 = vmax.f32 %v137, 0.0
  %v152 = vmax.f32 %v142, 0.0
  %v153 = vmax.f32 %v147, 0.0
  %v154 = vld [vmem:[%s3] sm:$0x7]
  %v155 = vld [vmem:[%s4] sm:$0x7]
  %157 = vset.pattern.permute.xlu0 0
  %158 = vperm.xlu0 %157, %v155
  %v159 = vpop.permute.xlu0 %158
  %vm161 = vcmask 261120
  %v163 = vsel %vm161, %v154, 0
  %165 = vmatprep.subr.mxu0 0.0
  %166 = vmatpush1.msra.mxu0 %v150
  %167 = vmatprep.subr.mxu0 0.0
  %168 = vmatpush1.msra.mxu0 %v151
  %169 = vmatprep.subr.mxu0 0.0
  %170 = vmatpush1.msra.mxu0 %v152
  %171 = vmatprep.subr.mxu0 0.0
  %172 = vmatpush1.msra.mxu0 %v153
  %173 = vmatprep.subr.mxu0 0.0
  %174 = vmatpush1.msra.mxu0 0.0
  %175 = vmatprep.subr.mxu0 0.0
  %176 = vmatpush1.msra.mxu0 0.0
  %177 = vmatprep.subr.mxu0 0.0
  %178 = vmatpush1.msra.mxu0 0.0
  %179 = vmatprep.subr.mxu0 0.0
  %180 = vmatpush1.msra.mxu0 0.0
  %181 = vmatprep.subr.mxu0 0.0
  %182 = vmatpush1.msra.mxu0 0.0
  %183 = vmatprep.subr.mxu0 0.0
  %184 = vmatpush1.msra.mxu0 0.0
  %185 = vmatprep.subr.mxu0 0.0
  %186 = vmatpush1.msra.mxu0 0.0
  %187 = vmatprep.subr.mxu0 0.0
  %188 = vmatpush1.msra.mxu0 0.0
  %189 = vmatprep.subr.mxu0 0.0
  %190 = vmatpush1.msra.mxu0 0.0
  %191 = vmatprep.subr.mxu0 0.0
  %192 = vmatpush1.msra.mxu0 0.0
  %193 = vmatprep.subr.mxu0 0.0
  %194 = vmatpush1.msra.mxu0 0.0
  %195 = vmatprep.subr.mxu0 0.0
  %196 = vmatpush1.msra.mxu0 0.0
  %197 = vmatprep.subr.mxu0 0.0
  %198 = vmatpush1.msra.mxu0 0.0
  %199 = vmatprep.subr.mxu0 0.0
  %200 = vmatpush1.msra.mxu0 0.0
  %201 = vmatprep.subr.mxu0 0.0
  %202 = vmatpush1.msra.mxu0 0.0
  %203 = vmatprep.subr.mxu0 0.0
  %204 = vmatpush1.msra.mxu0 0.0
  %205 = vmatprep.subr.mxu0 0.0
  %206 = vmatpush1.msra.mxu0 0.0
  %207 = vmatprep.subr.mxu0 0.0
  %208 = vmatpush1.msra.mxu0 0.0
  %209 = vmatprep.subr.mxu0 0.0
  %210 = vmatpush1.msra.mxu0 0.0
  %211 = vmatprep.subr.mxu0 0.0
  %212 = vmatpush1.msra.mxu0 0.0
  %213 = vmatprep.subr.mxu0 0.0
  %214 = vmatpush1.msra.mxu0 0.0
  %215 = vmatprep.subr.mxu0 0.0
  %216 = vmatpush1.msra.mxu0 0.0
  %217 = vmatprep.subr.mxu0 0.0
  %218 = vmatpush1.msra.mxu0 0.0
  %219 = vmatprep.subr.mxu0 0.0
  %220 = vmatpush1.msra.mxu0 0.0
  %221 = vmatprep.subr.mxu0 0.0
  %222 = vmatpush1.msra.mxu0 0.0
  %223 = vmatprep.subr.mxu0 0.0
  %224 = vmatpush1.msra.mxu0 0.0
  %225 = vmatprep.subr.mxu0 0.0
  %226 = vmatpush1.msra.mxu0 0.0
  %227 = vmatprep.subr.mxu0 0.0
  %228 = vmatpush1.msra.mxu0 0.0
  %229 = vmatprep.mubr.f32.mxu0 0.0
  %230 = vmatmul.mubr.f32.gmra.mrb[0].mxu0 %v163
  %v231 = vpop.f32.mrb[0].mxu0
  %v232 = vadd.f32 %v159, %v231
  %v233 = vpop.f32.mrb[0].mxu0
  %234 = vdwg.mxu0
  %vm235 = vcmask 26624
  %236 = vst.msk [vmem:[%s5] sm:$0x7] %vm235, %v232
  // Predicated region
  $region22: #{linear_qnet_forward.1} parent=0 // pred_check
    _
  $region23: #{linear_qnet_forward.1} parent=0 // pred_check_branch
    %238 = sbr.rel (0) target = $region25
  $region24: #{linear_qnet_forward.1} parent=0 // pred_region
    _
  $region25: #{linear_qnet_forward.1} parent=0 // pred_fallthru
    _
  // Predicated region
  $region26: #{linear_qnet_forward.1} parent=0 // pred_check
    _
  $region27: #{linear_qnet_forward.1} parent=0 // pred_check_branch
    %240 = sbr.rel (0) target = $region29
  $region28: #{linear_qnet_forward.1} parent=0 // pred_region
    _
  $region29: #{linear_qnet_forward.1} parent=0 // pred_fallthru
    _

</llo_original>
